<compile_context>
chip_gen: v6e
topology: v6e:2x2x1
jax: 0.10.0
libtpu: 0.0.40
codegen_flags: <defaults>
</compile_context>

<pallas_src>
import jax
import jax.numpy as jnp
from jax.experimental import pallas as pl
from jax.experimental.pallas import tpu as pltpu


# ----------------------------------------------------------------------------
# Kernel 1: fused 3x3 conv + bias + ReLU over HB output rows of one image
# ----------------------------------------------------------------------------
def _conv3x3_kernel(xm_ref, h1_ref, h2_ref, w_ref, b_ref, o_ref, p_ref):
    # xm_ref : (1, HB, W+2, Cin)  padded rows [hi*HB, hi*HB+HB)        (bf16)
    # h1_ref : (1, 1,  W+2, Cin)  padded row  hi*HB+HB                 (bf16)
    # h2_ref : (1, 1,  W+2, Cin)  padded row  hi*HB+HB+1               (bf16)
    # w_ref  : (9*Cin, Cout)      resident across the whole grid       (bf16)
    # b_ref  : (1, Cout)                                               (f32)
    # o_ref  : (1, HB*W, Cout)    flattened output rows                (bf16)
    # p_ref  : (HB*W, 9*Cin)      VMEM im2col scratch                  (bf16)
    hb = xm_ref.shape[1]
    wp = xm_ref.shape[2]
    cin = xm_ref.shape[3]
    w_out = wp - 2

    # Assemble the im2col patch matrix with plain static-slice ref copies
    # (no in-kernel reshapes).
    for h in range(hb):
        for kh in range(3):
            r = h + kh                       # padded row within the halo
            for kw in range(3):
                col = (kh * 3 + kw) * cin
                if r < hb:
                    seg = xm_ref[0, r, kw:kw + w_out, :]
                elif r == hb:
                    seg = h1_ref[0, 0, kw:kw + w_out, :]
                else:
                    seg = h2_ref[0, 0, kw:kw + w_out, :]
                p_ref[h * w_out:(h + 1) * w_out, col:col + cin] = seg

    acc = jnp.dot(p_ref[...], w_ref[...], preferred_element_type=jnp.float32)
    out = jnp.maximum(acc + b_ref[...], 0.0)            # f32 bias + ReLU
    o_ref[0] = out.astype(o_ref.dtype)


def _pick_hb(h, w):
    # Largest row-block that divides H and keeps the output tile (HB*W, Cout)
    # sublane-aligned (or equal to the full flattened dim).
    for hb in (8, 4, 2, 1):
        if h % hb == 0 and (hb == h or (hb * w) % 8 == 0):
            return hb
    return 1


def conv3x3_relu(x, w, b):
    # x: (N, H, W, Cin) bf16 ; w: (3, 3, Cin, Cout) bf16 ; b: (Cout,) f32
    n, h, wd, cin = x.shape
    cout = w.shape[-1]
    hb = _pick_hb(h, wd)
    xp = jnp.pad(x, ((0, 0), (1, 1), (1, 1), (0, 0)))   # pad=1, stride=1
    wp = wd + 2
    wmat = w.reshape(9 * cin, cout)

    out = pl.pallas_call(
        _conv3x3_kernel,
        out_shape=jax.ShapeDtypeStruct((n, h * wd, cout), jnp.bfloat16),
        grid=(n, h // hb),
        in_specs=[
            # main HB-row block + two single-row halo blocks of the same array
            pl.BlockSpec((1, hb, wp, cin), lambda ni, hi: (ni, hi, 0, 0)),
            pl.BlockSpec((1, 1, wp, cin),
                         lambda ni, hi: (ni, hi * hb + hb, 0, 0)),
            pl.BlockSpec((1, 1, wp, cin),
                         lambda ni, hi: (ni, hi * hb + hb + 1, 0, 0)),
            pl.BlockSpec((9 * cin, cout), lambda ni, hi: (0, 0)),
            pl.BlockSpec((1, cout), lambda ni, hi: (0, 0)),
        ],
        out_specs=pl.BlockSpec((1, hb * wd, cout), lambda ni, hi: (ni, hi, 0)),
        scratch_shapes=[pltpu.VMEM((hb * wd, 9 * cin), jnp.bfloat16)],
        compiler_params=pltpu.CompilerParams(
            dimension_semantics=("parallel", "parallel"),
            vmem_limit_bytes=48 * 1024 * 1024),
    )(xp, xp, xp, wmat, b.reshape(1, cout))
    return out.reshape(n, h, wd, cout)


# ----------------------------------------------------------------------------
# Kernel 2: 2x2 max-pool, many pooled rows per step
# ----------------------------------------------------------------------------
def _maxpool_kernel(x_ref, o_ref):
    # x_ref: (N, 2*HB, Wo, 2*C) -- adjacent W columns folded onto lanes by the
    # wrapper; o_ref: (N, HB, Wo, C)
    n, h2, wo, c2 = x_ref.shape
    c = c2 // 2
    x = x_ref[...].reshape(n, h2 // 2, 2, wo, c2)        # split of a major dim
    m = jnp.maximum(x[:, :, 0], x[:, :, 1])              # H-direction max
    o_ref[...] = jnp.maximum(m[..., :c], m[..., c:])     # W-direction max


def maxpool2x2(x):
    # x: (N, H, W, C) -> (N, H//2, W//2, C); H and W even
    n, h, wd, c = x.shape
    ho, wo = h // 2, wd // 2
    hb = 1
    for cand in (8, 4, 2, 1):
        if ho % cand == 0:
            hb = cand
            break
    xr = x.reshape(n, h, wo, 2 * c)   # free reshape: pairs W columns on lanes
    return pl.pallas_call(
        _maxpool_kernel,
        out_shape=jax.ShapeDtypeStruct((n, ho, wo, c), x.dtype),
        grid=(ho // hb,),
        in_specs=[pl.BlockSpec((n, 2 * hb, wo, 2 * c), lambda i: (0, i, 0, 0))],
        out_specs=pl.BlockSpec((n, hb, wo, c), lambda i: (0, i, 0, 0)),
        compiler_params=pltpu.CompilerParams(
            dimension_semantics=("parallel",),
            vmem_limit_bytes=32 * 1024 * 1024),
    )(xr)


# ----------------------------------------------------------------------------
# VGG16 features[0:30]  (13 convs + ReLU, 4 max-pools)
# ----------------------------------------------------------------------------
VGG_CFG = [64, 64, "M", 128, 128, "M", 256, 256, 256, "M",
           512, 512, 512, "M", 512, 512, 512]


def vgg16_features_0_30(x, params):
    i = 0
    for v in VGG_CFG:
        if v == "M":
            x = maxpool2x2(x)
        else:
            w, b = params[i]
            x = conv3x3_relu(x, w, b)
            i += 1
    return x


def init_vgg_params(key, cfg=VGG_CFG, cin=3):
    params = []
    c = cin
    for v in cfg:
        if v == "M":
            continue
        key, kw_, kb_ = jax.random.split(key, 3)
        fan_in = 9 * c
        w = (jax.random.normal(kw_, (3, 3, c, v), jnp.float32)
             * (2.0 / fan_in) ** 0.5).astype(jnp.bfloat16)
        b = jax.random.normal(kb_, (v,), jnp.float32) * 0.01
        params.append((w, b))
        c = v
    return params


# ----------------------------------------------------------------------------
# Kernel 3: fused nearest-upsample + Sal_map (1x1 conv over 1024 ch) + sigmoid
# (one image per step, lane-dense (N, H*W) output).
#   Sal(cat[raw, up(res)]) = wa.raw + up(wb.res) + b
# ----------------------------------------------------------------------------
def _salmap_kernel(rawt_ref, rest_ref, wa_ref, wb_ref, selT_ref, b_ref, o_ref):
    # rawt_ref : (1, C, H*W)     bf16 fine features (channels-major)
    # rest_ref : (1, C, hc*wc)   bf16 coarse features
    # wa/wb    : (1, C)          bf16 split Sal_map weight (raw | coarse half)
    # selT_ref : (hc*wc, H*W)    f32 nearest-neighbour selection matrix
    # b_ref    : (1, 1)          f32
    # o_ref    : (1, H*W)        f32
    pa = jnp.dot(wa_ref[...], rawt_ref[0], preferred_element_type=jnp.float32)
    pc = jnp.dot(wb_ref[...], rest_ref[0], preferred_element_type=jnp.float32)
    up = jnp.dot(pc, selT_ref[...], preferred_element_type=jnp.float32)
    z = pa + up + b_ref[...]
    o_ref[...] = 1.0 / (1.0 + jnp.exp(-z))


def sal_map_sigmoid(raw_feat, res_feat, wa, wb, b_sal):
    n, H, W, c = raw_feat.shape
    _, hc, wc, _ = res_feat.shape
    hw, hwc = H * W, hc * wc

    raw_t = jnp.transpose(raw_feat.reshape(n, hw, c), (0, 2, 1))   # (n, c, HW)
    res_t = jnp.transpose(res_feat.reshape(n, hwc, c), (0, 2, 1))  # (n, c, hwc)

    # PyTorch F.interpolate(mode='nearest') index formula.
    iy = (jnp.arange(H) * hc) // H
    ix = (jnp.arange(W) * wc) // W
    g = (iy[:, None] * wc + ix[None, :]).reshape(hw)               # (HW,)
    selT = (jnp.arange(hwc)[:, None] == g[None, :]).astype(jnp.float32)

    wa_row = wa.reshape(1, c).astype(jnp.bfloat16)
    wb_row = wb.reshape(1, c).astype(jnp.bfloat16)
    b2 = jnp.asarray(b_sal, jnp.float32).reshape(1, 1)

    out = pl.pallas_call(
        _salmap_kernel,
        out_shape=jax.ShapeDtypeStruct((n, hw), jnp.float32),
        grid=(n,),
        in_specs=[
            pl.BlockSpec((1, c, hw), lambda i: (i, 0, 0)),
            pl.BlockSpec((1, c, hwc), lambda i: (i, 0, 0)),
            pl.BlockSpec((1, c), lambda i: (0, 0)),
            pl.BlockSpec((1, c), lambda i: (0, 0)),
            pl.BlockSpec((hwc, hw), lambda i: (0, 0)),
            pl.BlockSpec((1, 1), lambda i: (0, 0)),
        ],
        out_specs=pl.BlockSpec((1, hw), lambda i: (i, 0)),
        compiler_params=pltpu.CompilerParams(
            dimension_semantics=("parallel",),
            vmem_limit_bytes=32 * 1024 * 1024),
    )(raw_t, res_t, wa_row, wb_row, selT, b2)
    return out.reshape(n, 1, H, W)


# ----------------------------------------------------------------------------
# Salicon forward
# ----------------------------------------------------------------------------
def salicon_forward(raw_img, resized_img, params):
    # raw_img, resized_img: NCHW float32 (same convention as the PyTorch module)
    fine_p, coarse_p, (wa, wb, b_sal) = params
    raw = jnp.transpose(raw_img, (0, 2, 3, 1)).astype(jnp.bfloat16)   # NHWC
    res = jnp.transpose(resized_img, (0, 2, 3, 1)).astype(jnp.bfloat16)

    raw_feat = vgg16_features_0_30(raw, fine_p)       # (N, H/16, W/16, 512)
    res_feat = vgg16_features_0_30(res, coarse_p)     # (N, h/16, w/16, 512)

    return sal_map_sigmoid(raw_feat, res_feat, wa, wb, b_sal)  # (N,1,H/16,W/16)


if __name__ == "__main__":
    key = jax.random.PRNGKey(0)
    k_fine, k_coarse, k_sal, k_raw, k_res = jax.random.split(key, 5)

    fine_params = init_vgg_params(k_fine)
    coarse_params = init_vgg_params(k_coarse)
    k_wa, k_wb = jax.random.split(k_sal)
    # Sal_map Conv2d(1024, 1, 1x1) split into raw-half / coarse-half weights.
    wa = (jax.random.normal(k_wa, (512,), jnp.float32)
          * (1.0 / 1024.0) ** 0.5).astype(jnp.bfloat16)
    wb = (jax.random.normal(k_wb, (512,), jnp.float32)
          * (1.0 / 1024.0) ** 0.5).astype(jnp.bfloat16)
    b_sal = jnp.zeros((1,), jnp.float32)
    params = (fine_params, coarse_params, (wa, wb, b_sal))

    # ---- kernel self-checks against pure-JAX references ---------------------
    kc1, kc2, kc3, kc4, kc5 = jax.random.split(jax.random.PRNGKey(1), 5)

    # 2x2 max-pool (exact)
    xt = jax.random.normal(kc1, (2, 8, 8, 64), jnp.float32).astype(jnp.bfloat16)
    ref_mp = xt.reshape(2, 4, 2, 4, 2, 64).max(axis=(2, 4))
    assert bool(jnp.array_equal(maxpool2x2(xt), ref_mp))

    # 3x3 conv + bias + ReLU (loose tol: kernel stores bf16)
    xc = jax.random.normal(kc2, (2, 16, 16, 64), jnp.float32).astype(jnp.bfloat16)
    wc3 = (jax.random.normal(kc3, (3, 3, 64, 128), jnp.float32)
           * (2.0 / (9 * 64)) ** 0.5).astype(jnp.bfloat16)
    bc = jax.random.normal(kc4, (128,), jnp.float32) * 0.01
    got_c = conv3x3_relu(xc, wc3, bc).astype(jnp.float32)
    ref_c = jax.lax.conv_general_dilated(
        xc.astype(jnp.float32), wc3.astype(jnp.float32), (1, 1), "SAME",
        dimension_numbers=("NHWC", "HWIO", "NHWC"),
        precision=jax.lax.Precision.HIGHEST)
    ref_c = jnp.maximum(ref_c + bc, 0.0)
    assert bool(jnp.max(jnp.abs(got_c - ref_c)) < 0.1)

    # Sal_map (upsample + 1x1 conv + sigmoid)
    rf = jax.random.normal(kc5, (2, 4, 4, 512), jnp.float32).astype(jnp.bfloat16)
    cf = jax.random.normal(kc1, (2, 2, 2, 512), jnp.float32).astype(jnp.bfloat16)
    got_s = sal_map_sigmoid(rf, cf, wa, wb, b_sal)
    iy = (jnp.arange(4) * 2) // 4
    ix = (jnp.arange(4) * 2) // 4
    up = cf[:, iy][:, :, ix].astype(jnp.float32)
    z = (jnp.einsum("nhwc,c->nhw", rf.astype(jnp.float32),
                    wa.astype(jnp.float32), precision=jax.lax.Precision.HIGHEST)
         + jnp.einsum("nhwc,c->nhw", up, wb.astype(jnp.float32),
                      precision=jax.lax.Precision.HIGHEST)
         + b_sal[0])
    ref_s = jax.nn.sigmoid(z)[:, None]
    assert bool(jnp.max(jnp.abs(got_s - ref_s)) < 2e-3)

    # ---- full forward --------------------------------------------------------
    # Small shapes consistent with the module: raw 64x64, coarse (resized) 32x32.
    raw_img = jax.random.normal(k_raw, (2, 3, 64, 64), jnp.float32)
    resized_img = jax.random.normal(k_res, (2, 3, 32, 32), jnp.float32)

    fwd = jax.jit(salicon_forward)
    out = jax.block_until_ready(fwd(raw_img, resized_img, params))
    assert out.shape == (2, 1, 4, 4), out.shape
    assert bool(jnp.all(jnp.isfinite(out)))
    assert bool(jnp.all((out >= 0.0) & (out <= 1.0)))
    print("KERNEL_OK")
</pallas_src>

<mosaic_0001>
module attributes {stable_mosaic.version = 11 : i64} {
  func.func @_maxpool_kernel(%arg0: i32, %arg1: memref<2x8x4x128xbf16, #tpu.memory_space<vmem>>, %arg2: memref<2x4x4x64xbf16, #tpu.memory_space<vmem>>) attributes {dimension_semantics = [#tpu.dimension_semantics<parallel>], iteration_bounds = array<i64: 1>, scalar_prefetch = 0 : i64, scratch_operands = 0 : i64, tpu.core_type = #tpu.core_type<tc>, window_params = [{transform_indices = @transform_0, window_bounds = array<i64: 2, 8, 4, 128>}, {transform_indices = @transform_1, window_bounds = array<i64: 2, 4, 4, 64>}]} {
    %c0 = arith.constant 0 : index
    %c0_0 = arith.constant 0 : index
    %c0_1 = arith.constant 0 : index
    %c0_2 = arith.constant 0 : index
    %0 = vector.load %arg1[%c0, %c0_0, %c0_1, %c0_2] : memref<2x8x4x128xbf16, #tpu.memory_space<vmem>>, vector<2x8x4x128xbf16>
    %1 = vector.shape_cast %0 : vector<2x8x4x128xbf16> to vector<2x4x2x4x128xbf16>
    %2 = vector.extract_strided_slice %1 {offsets = [0, 0, 0, 0, 0], sizes = [2, 4, 1, 4, 128], strides = [1, 1, 1, 1, 1]} : vector<2x4x2x4x128xbf16> to vector<2x4x1x4x128xbf16>
    %3 = vector.shape_cast %2 : vector<2x4x1x4x128xbf16> to vector<2x4x4x128xbf16>
    %4 = vector.extract_strided_slice %1 {offsets = [0, 0, 1, 0, 0], sizes = [2, 4, 1, 4, 128], strides = [1, 1, 1, 1, 1]} : vector<2x4x2x4x128xbf16> to vector<2x4x1x4x128xbf16>
    %5 = vector.shape_cast %4 : vector<2x4x1x4x128xbf16> to vector<2x4x4x128xbf16>
    %6 = arith.maximumf %3, %5 : vector<2x4x4x128xbf16>
    %7 = vector.extract_strided_slice %6 {offsets = [0, 0, 0, 0], sizes = [2, 4, 4, 64], strides = [1, 1, 1, 1]} : vector<2x4x4x128xbf16> to vector<2x4x4x64xbf16>
    %8 = vector.extract_strided_slice %6 {offsets = [0, 0, 0, 64], sizes = [2, 4, 4, 64], strides = [1, 1, 1, 1]} : vector<2x4x4x128xbf16> to vector<2x4x4x64xbf16>
    %9 = arith.maximumf %7, %8 : vector<2x4x4x64xbf16>
    %c0_3 = arith.constant 0 : index
    %c0_4 = arith.constant 0 : index
    %c0_5 = arith.constant 0 : index
    %c0_6 = arith.constant 0 : index
    %10 = vector.load %arg2[%c0_3, %c0_4, %c0_5, %c0_6] : memref<2x4x4x64xbf16, #tpu.memory_space<vmem>>, vector<2x4x4x64xbf16>
    tpu.vector_store %arg2[%c0_3, %c0_4, %c0_5, %c0_6], %9 {strides = array<i32>} : memref<2x4x4x64xbf16, #tpu.memory_space<vmem>>, vector<2x4x4x64xbf16>,
    return
  }
  func.func @transform_0(%arg0: i32) -> (i32, i32, i32, i32) {
    %c0_i32 = arith.constant 0 : i32
    %c0_i32_0 = arith.constant 0 : i32
    %c0_i32_1 = arith.constant 0 : i32
    %c0_i32_2 = arith.constant 0 : i32
    return %c0_i32, %arg0, %c0_i32_0, %c0_i32_1 : i32, i32, i32, i32
  }
  func.func @transform_1(%arg0: i32) -> (i32, i32, i32, i32) {
    %c0_i32 = arith.constant 0 : i32
    %c0_i32_0 = arith.constant 0 : i32
    %c0_i32_1 = arith.constant 0 : i32
    %c0_i32_2 = arith.constant 0 : i32
    return %c0_i32, %arg0, %c0_i32_0, %c0_i32_1 : i32, i32, i32, i32
  }
}

</mosaic_0001>

<llo_original>
// kernel: tpu_custom_call.1
$region0: #{tpu_custom_call.1}
  #allocation0 [shape = 'u32[]', space=smem, size = 0x4, offset = 0x4, fixed_abs, tag = 'smem constant byte address 0x4 - core index']
  #allocation1 [shape = 'u32[144,128]{1,0:T(1,128)}', space=vmem, size = 0x12000, scoped, tag = 'internal scratch']
  %s0 = inlined_call_operand.hbm [shape: bf16[2,8,4,128], index: 0, kind: input, shape index: {}]
  %s1 = inlined_call_operand.hbm [shape: bf16[2,4,4,64], index: 1, kind: output, shape index: {}]
  %s2 = sld [smem:[#allocation0]]
  $region18: #{tpu_custom_call.1} parent=0
    _
  %s4 = ssub.s32 1, %s2
  %s5 = scalar_select 0, %s4, %s2
  $region1: #{tpu_custom_call.1} parent=0
    #allocation2 [shape = 'u8[16384]{0}', space=vmem, size = 0x4000, scoped, tag = 'input window, operand 0, single buffered']
    #allocation3 [shape = 's32[1]{0}', space=sflag, size = 0x4, scoped, tag = 'scoped memory for tpu_custom_call.1']
    #allocation4 [shape = 's32[1]{0}', space=sflag, size = 0x4, scoped, tag = 'scoped memory for tpu_custom_call.1']
    #allocation5 [shape = 'u8[8192]{0}', space=vmem, size = 0x2000, scoped, tag = 'output window, operand 0, single buffered']
    %6 = vsyncpa [#allocation3], 0
    %7 = vsyncpa [#allocation4], 0
    // Predicated region
    $region2: #{tpu_custom_call.1} parent=1 // pred_check
      _
    $region3: #{tpu_custom_call.1} parent=1 // pred_check_branch
      %9 = sbr.rel (0) target = $region5
    $region4: #{tpu_custom_call.1} parent=1 // pred_region
      %s11 = ssub.s32 512, 512
      %12 = vsyncadd [#allocation3], %s11
      %s13 = sshll.u32 [#allocation2], 4
      %s14 = int_to_ptr.vmem [resolvable:$true] %s13
      %19 = dma.hbm_to_vmem [thread:$0]  %s0, 512, %s14, [#allocation3], 32, 32, 2
    $region5: #{tpu_custom_call.1} parent=1 // pred_fallthru
      _
    // Predicated region
    $region6: #{tpu_custom_call.1} parent=1 // pred_check
      _
    $region7: #{tpu_custom_call.1} parent=1 // pred_check_branch
      %21 = sbr.rel (0) target = $region9
    $region8: #{tpu_custom_call.1} parent=1 // pred_region
      %22 = dma.done [#allocation3], 512
    $region9: #{tpu_custom_call.1} parent=1 // pred_fallthru
      _
    %v23 = vld [vmem:[#allocation2] sm:$0x3]
    %v24 = vld [vmem:[#allocation2 + $0x2] sm:$0x3]
    %v25 = vld [vmem:[#allocation2 + $0x4] sm:$0x3]
    %v26 = vld [vmem:[#allocation2 + $0x6] sm:$0x3]
    %v27 = vld [vmem:[#allocation2 + $0x8] sm:$0x3]
    %v28 = vld [vmem:[#allocation2 + $0xa] sm:$0x3]
    %v29 = vld [vmem:[#allocation2 + $0xc] sm:$0x3]
    %v30 = vld [vmem:[#allocation2 + $0xe] sm:$0x3]
    %v31 = vld [vmem:[#allocation2 + $0x10] sm:$0x3]
    %v32 = vld [vmem:[#allocation2 + $0x12] sm:$0x3]
    %v33 = vld [vmem:[#allocation2 + $0x14] sm:$0x3]
    %v34 = vld [vmem:[#allocation2 + $0x16] sm:$0x3]
    %v35 = vld [vmem:[#allocation2 + $0x18] sm:$0x3]
    %v36 = vld [vmem:[#allocation2 + $0x1a] sm:$0x3]
    %v37 = vld [vmem:[#allocation2 + $0x1c] sm:$0x3]
    %v38 = vld [vmem:[#allocation2 + $0x1e] sm:$0x3]
    %v39 = vmax.bf16 %v23, %v24
    %v40 = vmax.bf16 %v25, %v26
    %v41 = vmax.bf16 %v27, %v28
    %v42 = vmax.bf16 %v29, %v30
    %v43 = vmax.bf16 %v31, %v32
    %v44 = vmax.bf16 %v33, %v34
    %v45 = vmax.bf16 %v35, %v36
    %v46 = vmax.bf16 %v37, %v38
    %55 = vrot.lane.b32.xlu0 %v39, 64
    %v56 = vpop.permute.xlu0 %55
    %57 = vrot.lane.b32.xlu0 %v40, 64
    %v58 = vpop.permute.xlu0 %57
    %59 = vrot.lane.b32.xlu0 %v41, 64
    %v60 = vpop.permute.xlu0 %59
    %61 = vrot.lane.b32.xlu0 %v42, 64
    %v62 = vpop.permute.xlu0 %61
    %63 = vrot.lane.b32.xlu0 %v43, 64
    %v64 = vpop.permute.xlu0 %63
    %65 = vrot.lane.b32.xlu0 %v44, 64
    %v66 = vpop.permute.xlu0 %65
    %67 = vrot.lane.b32.xlu0 %v45, 64
    %v68 = vpop.permute.xlu0 %67
    %69 = vrot.lane.b32.xlu0 %v46, 64
    %v70 = vpop.permute.xlu0 %69
    %v79 = vmax.bf16 %v39, %v56
    %v80 = vmax.bf16 %v40, %v58
    %v81 = vmax.bf16 %v41, %v60
    %v82 = vmax.bf16 %v42, %v62
    %v83 = vmax.bf16 %v43, %v64
    %v84 = vmax.bf16 %v44, %v66
    %v85 = vmax.bf16 %v45, %v68
    %v86 = vmax.bf16 %v46, %v70
    %vm87 = vcmask 517120
    %88 = vst.msk [vmem:[#allocation5] sm:$0x3] %vm87, %v79
    %89 = vst.msk [vmem:[#allocation5 + $0x2] sm:$0x3] %vm87, %v80
    %90 = vst.msk [vmem:[#allocation5 + $0x4] sm:$0x3] %vm87, %v81
    %91 = vst.msk [vmem:[#allocation5 + $0x6] sm:$0x3] %vm87, %v82
    %92 = vst.msk [vmem:[#allocation5 + $0x8] sm:$0x3] %vm87, %v83
    %93 = vst.msk [vmem:[#allocation5 + $0xa] sm:$0x3] %vm87, %v84
    %94 = vst.msk [vmem:[#allocation5 + $0xc] sm:$0x3] %vm87, %v85
    %95 = vst.msk [vmem:[#allocation5 + $0xe] sm:$0x3] %vm87, %v86
    // Predicated region
    $region10: #{tpu_custom_call.1} parent=1 // pred_check
      _
    $region11: #{tpu_custom_call.1} parent=1 // pred_check_branch
      %97 = sbr.rel (0) target = $region13
    $region12: #{tpu_custom_call.1} parent=1 // pred_region
      %s99 = ssub.s32 256, 256
      %100 = vsyncadd [#allocation4], %s99
      %s101 = sshll.u32 [#allocation5], 4
      %s102 = int_to_ptr.vmem [resolvable:$true] %s101
      %107 = dma.vmem_to_hbm [thread:$0]  %s102, 256, %s1, [#allocation4], 32, 32, 2
    $region13: #{tpu_custom_call.1} parent=1 // pred_fallthru
      _
    // Predicated region
    $region14: #{tpu_custom_call.1} parent=1 // pred_check
      _
    $region15: #{tpu_custom_call.1} parent=1 // pred_check_branch
      %109 = sbr.rel (0) target = $region17
    $region16: #{tpu_custom_call.1} parent=1 // pred_region
      %110 = dma.done [#allocation4], 256
    $region17: #{tpu_custom_call.1} parent=1 // pred_fallthru
      _
    %111 = vsyncpa [#allocation3], 1
    %112 = vsyncpa [#allocation4], 1

</llo_original>
